<compile_context>
chip_gen: v7x
topology: tpu7x:2x2x1
jax: 0.10.0
libtpu: 0.0.40
codegen_flags: <defaults>
</compile_context>

<pallas_src>
import re
import numpy as np
import jax
import jax.numpy as jnp
from jax.experimental import pallas as pl
from jax.experimental.pallas import tpu as pltpu


def _make_regression_kernel(num: int):
    def kernel(c_ref, p_ref, x_ref, o_ref):
        # Widen to f32 in-register (free VPU op); transcendentals on EUP.
        x = x_ref[...].astype(jnp.float32)
        l2 = jnp.log2(x)
        acc = c_ref[0] * jnp.exp2(p_ref[0] * l2)
        for i in range(1, num):          # num is tiny & static -> unrolled
            acc = acc + c_ref[i] * jnp.exp2(p_ref[i] * l2)
        o_ref[...] = acc.astype(o_ref.dtype)
    return kernel


def _round_up(a: int, b: int) -> int:
    return ((a + b - 1) // b) * b


def _tpu_generation() -> int:
    try:
        kind = jax.devices()[0].device_kind.lower()
    except Exception:
        return 0
    m = re.search(r"(\d+)", kind)
    return int(m.group(1)) if m else 0


def regression_forward(x, c_array, p_array):
    """y = sum_i c_array[i] * x ** p_array[i], elementwise over x (x > 0)."""
    num = int(c_array.shape[0])
    orig_shape = x.shape
    orig_dtype = x.dtype
    itemsize = jnp.dtype(orig_dtype).itemsize
    total = int(np.prod(orig_shape)) if orig_shape else 1

    gen = _tpu_generation()
    if gen >= 7:
        target_block_bytes = 8 << 20
    elif gen == 6:
        target_block_bytes = 4 << 20
    else:
        target_block_bytes = 2 << 20

    # ---- Lane-dense width W: prefer one that divides total exactly (no copies).
    W = None
    for cand in (512, 256, 128):
        if total % cand == 0:
            W = cand
            break

    padded = W is None
    if not padded:
        rows = total // W
        x2d = x.reshape(rows, W)                      # free metadata reshape
    else:
        # Fallback: pad the flattened input with 1.0 (log2(1) == 0, finite).
        W = 512 if total >= 512 * 8 else 128
        rows = -(-total // W)
        pad = rows * W - total
        xf = jnp.ravel(x)
        xf = jnp.concatenate([xf, jnp.ones((pad,), orig_dtype)])
        x2d = xf.reshape(rows, W)

    # ---- Rows per block: big mem-bound tiles, multiple of 8 (or the full dim).
    tm_target = max(8, (target_block_bytes // (itemsize * W)) // 8 * 8)
    if rows <= tm_target:
        tm = rows                                     # single block, full dim
    else:
        tm = tm_target                                # multiple of 8

    grid = pl.cdiv(rows, tm)

    # v7x only: make sure both TensorCores get work (each has its own EUP +
    # HBM port), and prefer an even number of grid steps for balance.
    if gen >= 7:
        if grid == 1 and rows >= 16:
            tm = _round_up(-(-rows // 2), 8)
            grid = pl.cdiv(rows, tm)
        elif grid > 1 and grid % 2 == 1:
            tm_even = _round_up(-(-rows // (grid + 1)), 8)
            if tm_even >= 8:
                tm = tm_even
                grid = pl.cdiv(rows, tm)

    kernel = _make_regression_kernel(num)
    cost = pl.CostEstimate(
        flops=2 * num * rows * W,
        transcendentals=(num + 1) * rows * W,
        bytes_accessed=2 * itemsize * rows * W,
    )

    # VMEM budget: double-buffered in + out blocks (+ margin), capped for v7x.
    block_bytes = 2 * (2 * tm * W * itemsize)
    vmem_limit = min(max(block_bytes + (8 << 20), 32 << 20), 60 << 20)

    y2d = pl.pallas_call(
        kernel,
        out_shape=jax.ShapeDtypeStruct((rows, W), orig_dtype),
        grid_spec=pltpu.PrefetchScalarGridSpec(
            num_scalar_prefetch=0,
            grid=(grid,),
            in_specs=[
                pl.BlockSpec(memory_space=pltpu.MemorySpace.SMEM),  # c_array
                pl.BlockSpec(memory_space=pltpu.MemorySpace.SMEM),  # p_array
                pl.BlockSpec((tm, W), lambda i: (i, 0)),            # x tile
            ],
            out_specs=pl.BlockSpec((tm, W), lambda i: (i, 0)),
        ),
        compiler_params=pltpu.CompilerParams(
            dimension_semantics=("parallel",),
            vmem_limit_bytes=vmem_limit,
        ),
        cost_estimate=cost,
    )(jnp.asarray(c_array, jnp.float32), jnp.asarray(p_array, jnp.float32), x2d)

    if padded:
        y = y2d.reshape(-1)[:total].reshape(orig_shape)
    else:
        y = y2d.reshape(orig_shape)                   # free metadata reshape
    return y


if __name__ == "__main__":
    # Deterministic "module init": c_np_array given at construction,
    # p_array ~ Uniform(-1, 1) (matching torch.nn.init.uniform_).
    c_np_array = np.array([1.5, -0.75, 2.0], dtype=np.float32)   # num = 3
    key = jax.random.PRNGKey(0)
    k_p, k_x = jax.random.split(key)
    num = c_np_array.size
    c_array = jnp.asarray(c_np_array, dtype=jnp.float32)
    p_array = jax.random.uniform(k_p, (num,), jnp.float32, minval=-1.0, maxval=1.0)

    # Small positive inputs (power with float exponent requires x > 0).
    x = jax.random.uniform(k_x, (2, 4, 16, 16), jnp.float32,
                           minval=0.5, maxval=2.0)

    y = regression_forward(x, c_array, p_array)
    y = jax.block_until_ready(y)

    # Pure-JAX reference check (same accumulation order as the torch forward).
    y_ref = c_array[0] * jnp.power(x, p_array[0])
    for i in range(1, num):
        y_ref = y_ref + c_array[i] * jnp.power(x, p_array[i])
    np.testing.assert_allclose(np.asarray(y), np.asarray(y_ref),
                               rtol=1e-5, atol=1e-5)
    print("KERNEL_OK")
</pallas_src>

<mosaic_0001>
module attributes {stable_mosaic.version = 11 : i64} {
  func.func @kernel(%arg0: i32, %arg1: memref<3xf32, #tpu.memory_space<smem>>, %arg2: memref<3xf32, #tpu.memory_space<smem>>, %arg3: memref<4x512xf32, #tpu.memory_space<vmem>>, %arg4: memref<4x512xf32, #tpu.memory_space<vmem>>) attributes {dimension_semantics = [#tpu.dimension_semantics<parallel>], iteration_bounds = array<i64: 1>, scalar_prefetch = 0 : i64, scratch_operands = 0 : i64, tpu.core_type = #tpu.core_type<tc>, window_params = [{transform_indices = @transform_0, window_bounds = array<i64: 3>}, {transform_indices = @transform_1, window_bounds = array<i64: 3>}, {transform_indices = @transform_2, window_bounds = array<i64: 4, 512>}, {transform_indices = @transform_3, window_bounds = array<i64: 4, 512>}]} {
    %c0 = arith.constant 0 : index
    %c0_0 = arith.constant 0 : index
    %0 = vector.load %arg3[%c0, %c0_0] : memref<4x512xf32, #tpu.memory_space<vmem>>, vector<4x512xf32>
    %1 = math.log %0 : vector<4x512xf32>
    %cst = arith.constant 2.000000e+00 : f32
    %2 = math.log %cst : f32
    %3 = vector.broadcast %2 : f32 to vector<4x512xf32>
    %4 = arith.divf %1, %3 : vector<4x512xf32>
    %c0_1 = arith.constant 0 : index
    %5 = memref.load %arg1[%c0_1] : memref<3xf32, #tpu.memory_space<smem>>
    %c0_2 = arith.constant 0 : index
    %6 = memref.load %arg2[%c0_2] : memref<3xf32, #tpu.memory_space<smem>>
    %7 = vector.broadcast %6 : f32 to vector<4x512xf32>
    %8 = arith.mulf %7, %4 : vector<4x512xf32>
    %9 = math.exp2 %8 : vector<4x512xf32>
    %10 = vector.broadcast %5 : f32 to vector<4x512xf32>
    %11 = arith.mulf %10, %9 : vector<4x512xf32>
    %c1 = arith.constant 1 : index
    %12 = memref.load %arg1[%c1] : memref<3xf32, #tpu.memory_space<smem>>
    %c1_3 = arith.constant 1 : index
    %13 = memref.load %arg2[%c1_3] : memref<3xf32, #tpu.memory_space<smem>>
    %14 = vector.broadcast %13 : f32 to vector<4x512xf32>
    %15 = arith.mulf %14, %4 : vector<4x512xf32>
    %16 = math.exp2 %15 : vector<4x512xf32>
    %17 = vector.broadcast %12 : f32 to vector<4x512xf32>
    %18 = arith.mulf %17, %16 : vector<4x512xf32>
    %19 = arith.addf %11, %18 : vector<4x512xf32>
    %c2 = arith.constant 2 : index
    %20 = memref.load %arg1[%c2] : memref<3xf32, #tpu.memory_space<smem>>
    %c2_4 = arith.constant 2 : index
    %21 = memref.load %arg2[%c2_4] : memref<3xf32, #tpu.memory_space<smem>>
    %22 = vector.broadcast %21 : f32 to vector<4x512xf32>
    %23 = arith.mulf %22, %4 : vector<4x512xf32>
    %24 = math.exp2 %23 : vector<4x512xf32>
    %25 = vector.broadcast %20 : f32 to vector<4x512xf32>
    %26 = arith.mulf %25, %24 : vector<4x512xf32>
    %27 = arith.addf %19, %26 : vector<4x512xf32>
    %c0_5 = arith.constant 0 : index
    %c0_6 = arith.constant 0 : index
    %28 = vector.load %arg4[%c0_5, %c0_6] : memref<4x512xf32, #tpu.memory_space<vmem>>, vector<4x512xf32>
    tpu.vector_store %arg4[%c0_5, %c0_6], %27 {strides = array<i32>} : memref<4x512xf32, #tpu.memory_space<vmem>>, vector<4x512xf32>,
    return
  }
  func.func @transform_0(%arg0: i32) -> i32 {
    %c0_i32 = arith.constant 0 : i32
    %c0_i32_0 = arith.constant 0 : i32
    return %c0_i32 : i32
  }
  func.func @transform_1(%arg0: i32) -> i32 {
    %c0_i32 = arith.constant 0 : i32
    %c0_i32_0 = arith.constant 0 : i32
    return %c0_i32 : i32
  }
  func.func @transform_2(%arg0: i32) -> (i32, i32) {
    %c0_i32 = arith.constant 0 : i32
    %c0_i32_0 = arith.constant 0 : i32
    return %arg0, %c0_i32 : i32, i32
  }
  func.func @transform_3(%arg0: i32) -> (i32, i32) {
    %c0_i32 = arith.constant 0 : i32
    %c0_i32_0 = arith.constant 0 : i32
    return %arg0, %c0_i32 : i32, i32
  }
}

</mosaic_0001>

<llo_original>
// kernel: tpu_custom_call.1
$region0: #{tpu_custom_call.1}
  #allocation0 [shape = 'u32[]', space=smem, size = 0x4, offset = 0x4, fixed_abs, tag = 'smem constant byte address 0x4 - core index']
  #allocation1 [shape = 'u32[144,128]{1,0:T(1,128)}', space=vmem, size = 0x12000, scoped, tag = 'internal scratch']
  %s0 = inlined_call_operand.hbm [shape: f32[3], index: 0, kind: input, shape index: {}]
  %s1 = inlined_call_operand.vmem [shape: f32[3], index: 1, kind: input, shape index: {}]
  %s2 = inlined_call_operand.hbm [shape: f32[4,512], index: 2, kind: input, shape index: {}]
  %s3 = inlined_call_operand.hbm [shape: f32[4,512], index: 3, kind: output, shape index: {}]
  %s4 = sld [smem:[#allocation0]]
  $region34: #{tpu_custom_call.1} parent=0
    _
  %s6 = ssub.s32 1, %s4
  %s7 = scalar_select 0, %s6, %s4
  $region1: #{tpu_custom_call.1} parent=0
    #allocation2 [shape = 'u8[512]{0}', space=smem, size = 0x200, scoped, tag = 'input window, operand 0, single buffered']
    #allocation3 [shape = 's32[1]{0}', space=sflag, size = 0x4, scoped, tag = 'scoped memory for tpu_custom_call.1']
    #allocation4 [shape = 's32[1]{0}', space=sflag, size = 0x4, scoped, tag = 'scoped memory for tpu_custom_call.1']
    #allocation5 [shape = 's32[1]{0}', space=sflag, size = 0x4, scoped, tag = 'scoped memory for tpu_custom_call.1']
    #allocation6 [shape = 's32[1]{0}', space=sflag, size = 0x4, scoped, tag = 'scoped memory for tpu_custom_call.1']
    #allocation7 [shape = 'u8[512]{0}', space=smem, size = 0x200, scoped, tag = 'input window, operand 1, single buffered']
    #allocation8 [shape = 'u8[8192]{0}', space=vmem, size = 0x2000, scoped, tag = 'input window, operand 2, single buffered']
    #allocation9 [shape = 'u8[8192]{0}', space=vmem, size = 0x2000, scoped, tag = 'output window, operand 0, single buffered']
    %8 = vsyncpa [#allocation5], 0
    %9 = vsyncpa [#allocation6], 0
    %10 = vsyncpa [#allocation3], 0
    %11 = vsyncpa [#allocation4], 0
    // Predicated region
    $region2: #{tpu_custom_call.1} parent=1 // pred_check
      _
    $region3: #{tpu_custom_call.1} parent=1 // pred_check_branch
      %13 = sbr.rel (0) target = $region5
    $region4: #{tpu_custom_call.1} parent=1 // pred_region
      %s15 = ssub.s32 16, 16
      %16 = vsyncadd [#allocation5], %s15
      %19 = dma.hbm_to_smem %s0, 16, [#allocation2], [#allocation5]
    $region5: #{tpu_custom_call.1} parent=1 // pred_fallthru
      _
    // Predicated region
    $region6: #{tpu_custom_call.1} parent=1 // pred_check
      _
    $region7: #{tpu_custom_call.1} parent=1 // pred_check_branch
      %21 = sbr.rel (0) target = $region9
    $region8: #{tpu_custom_call.1} parent=1 // pred_region
      %s23 = ssub.s32 16, 16
      %24 = vsyncadd [#allocation6], %s23
      %s26 = sshll.u32 %s1, 4
      %s27 = int_to_ptr.vmem [resolvable:$true] %s26
      %29 = dma.vmem_to_smem %s27, 16, [#allocation7], [#allocation6]
    $region9: #{tpu_custom_call.1} parent=1 // pred_fallthru
      _
    // Predicated region
    $region10: #{tpu_custom_call.1} parent=1 // pred_check
      _
    $region11: #{tpu_custom_call.1} parent=1 // pred_check_branch
      %31 = sbr.rel (0) target = $region13
    $region12: #{tpu_custom_call.1} parent=1 // pred_region
      %s33 = ssub.s32 256, 256
      %34 = vsyncadd [#allocation3], %s33
      %s36 = sshll.u32 [#allocation8], 4
      %s37 = int_to_ptr.vmem [resolvable:$true] %s36
      %39 = dma.hbm_to_vmem [thread:$0]  %s2, 256, %s37, [#allocation3]
    $region13: #{tpu_custom_call.1} parent=1 // pred_fallthru
      _
    // Predicated region
    $region14: #{tpu_custom_call.1} parent=1 // pred_check
      _
    $region15: #{tpu_custom_call.1} parent=1 // pred_check_branch
      %41 = sbr.rel (0) target = $region17
    $region16: #{tpu_custom_call.1} parent=1 // pred_region
      %42 = dma.done [#allocation5], 16
    $region17: #{tpu_custom_call.1} parent=1 // pred_fallthru
      _
    // Predicated region
    $region18: #{tpu_custom_call.1} parent=1 // pred_check
      _
    $region19: #{tpu_custom_call.1} parent=1 // pred_check_branch
      %44 = sbr.rel (0) target = $region21
    $region20: #{tpu_custom_call.1} parent=1 // pred_region
      %45 = dma.done [#allocation6], 16
    $region21: #{tpu_custom_call.1} parent=1 // pred_fallthru
      _
    // Predicated region
    $region22: #{tpu_custom_call.1} parent=1 // pred_check
      _
    $region23: #{tpu_custom_call.1} parent=1 // pred_check_branch
      %47 = sbr.rel (0) target = $region25
    $region24: #{tpu_custom_call.1} parent=1 // pred_region
      %48 = dma.done [#allocation3], 256
    $region25: #{tpu_custom_call.1} parent=1 // pred_fallthru
      _
    %49 = sfence
    %v50 = vld [vmem:[#allocation8] sm:$0xff]
    %v51 = vld [vmem:[#allocation8 + $0x8] sm:$0xff]
    %v52 = vlog2.pop %v50
    %v53 = vmul.f32 %v52, 0.6931472
    %v54 = vlog2.pop %v51
    %v55 = vmul.f32 %v54, 0.6931472
    %v56 = vrcp.pop 0.6931472
    %v57 = vmul.f32 %v53, %v56
    %v58 = vmul.f32 %v55, %v56
    %s59 = sld [smem:[#allocation2]]
    %s60 = sld [smem:[#allocation7]]
    %v61 = vstv %s60
    %v62 = vmul.f32 %v61, %v57
    %v63 = vmul.f32 %v61, %v58
    %v64 = vpow.pop %v62
    %v65 = vpow.pop %v63
    %v66 = vstv %s59
    %v67 = vmul.f32 %v66, %v64
    %v68 = vmul.f32 %v66, %v65
    %s69 = sld [smem:[#allocation2 + $0x1]]
    %s70 = sld [smem:[#allocation7 + $0x1]]
    %v71 = vstv %s70
    %v72 = vmul.f32 %v71, %v57
    %v73 = vmul.f32 %v71, %v58
    %v74 = vpow.pop %v72
    %v75 = vpow.pop %v73
    %v76 = vstv %s69
    %v77 = vmul.f32 %v76, %v74
    %v78 = vmul.f32 %v76, %v75
    %v79 = vadd.f32 %v67, %v77
    %v80 = vadd.f32 %v68, %v78
    %s81 = sld [smem:[#allocation2 + $0x2]]
    %s82 = sld [smem:[#allocation7 + $0x2]]
    %v83 = vstv %s82
    %v84 = vmul.f32 %v83, %v57
    %v85 = vmul.f32 %v83, %v58
    %v86 = vpow.pop %v84
    %v87 = vpow.pop %v85
    %v88 = vstv %s81
    %v89 = vmul.f32 %v88, %v86
    %v90 = vmul.f32 %v88, %v87
    %v91 = vadd.f32 %v79, %v89
    %v92 = vadd.f32 %v80, %v90
    %93 = vst [vmem:[#allocation9] sm:$0xff] %v91
    %94 = vst [vmem:[#allocation9 + $0x8] sm:$0xff] %v92
    // Predicated region
    $region26: #{tpu_custom_call.1} parent=1 // pred_check
      _
    $region27: #{tpu_custom_call.1} parent=1 // pred_check_branch
      %96 = sbr.rel (0) target = $region29
    $region28: #{tpu_custom_call.1} parent=1 // pred_region
      %s98 = ssub.s32 256, 256
      %99 = vsyncadd [#allocation4], %s98
      %s101 = sshll.u32 [#allocation9], 4
      %s102 = int_to_ptr.vmem [resolvable:$true] %s101
      %104 = dma.vmem_to_hbm [thread:$0]  %s102, 256, %s3, [#allocation4]
    $region29: #{tpu_custom_call.1} parent=1 // pred_fallthru
      _
    // Predicated region
    $region30: #{tpu_custom_call.1} parent=1 // pred_check
      _
    $region31: #{tpu_custom_call.1} parent=1 // pred_check_branch
      %106 = sbr.rel (0) target = $region33
    $region32: #{tpu_custom_call.1} parent=1 // pred_region
      %107 = dma.done [#allocation4], 256
    $region33: #{tpu_custom_call.1} parent=1 // pred_fallthru
      _
    %108 = vsyncpa [#allocation3], 1
    %109 = vsyncpa [#allocation4], 1
    %110 = vsyncpa [#allocation5], 1
    %111 = vsyncpa [#allocation6], 1

</llo_original>
